<compile_context>
chip_gen: v7x
topology: tpu7x:2x2x1
jax: 0.10.0
libtpu: 0.0.40
codegen_flags: <defaults>
</compile_context>

<pallas_src>
import functools

import jax
import jax.numpy as jnp
from jax.experimental import pallas as pl
from jax.experimental.pallas import tpu as pltpu


def _round_up(x, m):
    return (x + m - 1) // m * m


# ------------------------------ Pallas kernels ------------------------------ #
def _apply_activation(y, activation):
    """y is f32. Activation applied in the kernel epilogue."""
    if activation == "mish":
        # mish(x) = x * tanh(softplus(x)) = x * (t^2 - 1) / (t^2 + 1), t = 1 + e^x.
        # Clamp the exp argument: for x > 20 the ratio is already 1.0 in f32.
        t = 1.0 + jnp.exp(jnp.minimum(y, 20.0))
        t2 = t * t
        return y * (t2 - 1.0) * pl.reciprocal(t2 + 1.0, approx=True)
    if activation == "relu":
        return jnp.maximum(y, 0.0)
    if activation == "leaky":
        return jnp.where(y >= 0.0, y, 0.1 * y)
    if activation == "linear":
        return y
    raise NotImplementedError(activation)


def _conv_mm_kernel(x_ref, w_ref, b_ref, o_ref, *, activation):
    # Single full-K reduction step: no scratch accumulator, no pl.when.
    acc = jnp.dot(x_ref[...], w_ref[...], preferred_element_type=jnp.float32)
    y = acc + b_ref[...]                      # folded-BN bias (per output channel)
    o_ref[...] = _apply_activation(y, activation).astype(o_ref.dtype)


def _conv_mm_kernel_ktiled(x_ref, w_ref, b_ref, o_ref, acc_ref, *, activation):
    # K is a grid axis ("arbitrary"): f32 accumulator scratch + init/finalize.
    @pl.when(pl.program_id(2) == 0)
    def _():
        acc_ref[...] = jnp.zeros_like(acc_ref)

    acc_ref[...] += jnp.dot(x_ref[...], w_ref[...],
                            preferred_element_type=jnp.float32)

    @pl.when(pl.program_id(2) == pl.num_programs(2) - 1)
    def _():
        y = acc_ref[...] + b_ref[...]
        o_ref[...] = _apply_activation(y, activation).astype(o_ref.dtype)


# ------------------------------ tile selection ------------------------------ #
_VMEM_BUDGET = 28 << 20        # conservative across v5e / v6e / v7x
_K_TILE_THRESHOLD = 2048       # beyond this, tile K (bounds VMEM on v7x)
_K_TILE = 512


def _select_tiles(M, K, N, out_bytes):
    """Generation-safe tile sizes + VMEM estimate."""
    N_pad = _round_up(N, 128)
    use_ktile = K > _K_TILE_THRESHOLD
    tk = _K_TILE if use_ktile else None
    K_pad = _round_up(K, _K_TILE if use_ktile else 128)
    kblk = tk if use_ktile else K_pad

    M_pad = _round_up(M, 16)                 # bf16 sublane packing = 16 rows
    tm = M_pad if M_pad <= 512 else 512

    def est(tm_, tn_):
        e = 2 * (tm_ * kblk + kblk * tn_) * 2      # bf16 LHS+RHS, double-buffered
        e += 2 * tn_ * 4                           # (1, tn) f32 bias, double-buffered
        e += 2 * tm_ * tn_ * out_bytes             # output tile, double-buffered
        if use_ktile:
            e += tm_ * tn_ * 4                     # f32 accumulator scratch
        return e

    if est(tm, N_pad) <= _VMEM_BUDGET:
        # Resident RHS: one N block -> weights/bias DMA'd once per kernel call.
        tn = N_pad
        if M_pad >= 512:
            # keep >= 2 blocks along the "parallel" M axis (megacore / v7x).
            tm = min(512, _round_up(-(-M_pad // 2), 16))
    else:
        tn = 256 if N_pad % 256 == 0 else 128
        while est(tm, tn) > _VMEM_BUDGET and tm > 32:
            tm = max(32, _round_up(tm // 2, 16))

    M_pad = _round_up(M_pad, tm)
    return tm, tk, tn, M_pad, K_pad, N_pad, est(tm, tn)


# ------------------------------ fused matmul -------------------------------- #
def _fused_conv_matmul(cols, wmat, bias, activation, out_dtype=jnp.bfloat16):
    """(M,K)@(K,N) + per-channel bias + activation, fused on the MXU."""
    M, K = cols.shape
    _, N = wmat.shape
    out_bytes = jnp.dtype(out_dtype).itemsize

    tm, tk, tn, M_pad, K_pad, N_pad, vmem_est = _select_tiles(M, K, N, out_bytes)

    # cols is already bf16 (cast in the im2col producer); one pad, no extra copy.
    cols_p = jnp.pad(cols.astype(jnp.bfloat16),
                     ((0, M_pad - M), (0, K_pad - K)))
    w_p = jnp.pad(wmat, ((0, K_pad - K), (0, N_pad - N))).astype(jnp.bfloat16)
    b_p = jnp.pad(bias, (0, N_pad - N)).reshape(1, N_pad).astype(jnp.float32)

    vmem_limit = int(min(max(vmem_est + (8 << 20), 32 << 20), 40 << 20))

    if tk is None:
        grid = (M_pad // tm, N_pad // tn)
        out = pl.pallas_call(
            functools.partial(_conv_mm_kernel, activation=activation),
            out_shape=jax.ShapeDtypeStruct((M_pad, N_pad), out_dtype),
            grid_spec=pltpu.PrefetchScalarGridSpec(
                num_scalar_prefetch=0,
                grid=grid,
                in_specs=[
                    pl.BlockSpec((tm, K_pad), lambda i, j: (i, 0)),   # im2col rows
                    pl.BlockSpec((K_pad, tn), lambda i, j: (0, j)),   # BN-folded W
                    pl.BlockSpec((1, tn), lambda i, j: (0, j)),       # bias
                ],
                out_specs=pl.BlockSpec((tm, tn), lambda i, j: (i, j)),
            ),
            compiler_params=pltpu.CompilerParams(
                dimension_semantics=("parallel", "parallel"),
                vmem_limit_bytes=vmem_limit),
        )(cols_p, w_p, b_p)
    else:
        grid = (M_pad // tm, N_pad // tn, K_pad // tk)
        out = pl.pallas_call(
            functools.partial(_conv_mm_kernel_ktiled, activation=activation),
            out_shape=jax.ShapeDtypeStruct((M_pad, N_pad), out_dtype),
            grid_spec=pltpu.PrefetchScalarGridSpec(
                num_scalar_prefetch=0,
                grid=grid,
                in_specs=[
                    pl.BlockSpec((tm, tk), lambda i, j, k: (i, k)),
                    pl.BlockSpec((tk, tn), lambda i, j, k: (k, j)),
                    pl.BlockSpec((1, tn), lambda i, j, k: (0, j)),
                ],
                out_specs=pl.BlockSpec((tm, tn), lambda i, j, k: (i, j)),
                scratch_shapes=[pltpu.VMEM((tm, tn), jnp.float32)],
            ),
            compiler_params=pltpu.CompilerParams(
                dimension_semantics=("parallel", "parallel", "arbitrary"),
                vmem_limit_bytes=vmem_limit),
        )(cols_p, w_p, b_p)
    return out[:M, :N]


# --------------------------- Conv_Bn_Activation ----------------------------- #
def conv_bn_act(x_nchw, params, *, stride, activation, out_dtype=jnp.bfloat16):
    """PyTorch-like interface: NCHW in / NCHW out. params['w'] is (KH,KW,Cin,Cout).

    The output is emitted in bf16 (the dtype the next Conv_Bn_Activation layer
    consumes) to halve HBM writeback; pass out_dtype=jnp.float32 for exact
    interface parity at the cost of bandwidth.
    """
    w, bias = params["w"], params["bias"]
    kh, kw, cin, cout = w.shape
    # Cast to bf16 up front so im2col / transpose move half the bytes and the
    # kernel input needs no extra astype materialization.
    x = jnp.transpose(x_nchw.astype(jnp.bfloat16), (0, 2, 3, 1))   # NCHW -> NHWC
    n, h, wd, _ = x.shape
    pad = (kh - 1) // 2
    ho = (h + 2 * pad - kh) // stride + 1
    wo = (wd + 2 * pad - kw) // stride + 1

    if kh == 1 and kw == 1 and stride == 1:
        cols = x.reshape(n * h * wd, cin)
    else:
        xp = jnp.pad(x, ((0, 0), (pad, pad), (pad, pad), (0, 0)))
        slices = [
            xp[:, dy:dy + (ho - 1) * stride + 1:stride,
               dx:dx + (wo - 1) * stride + 1:stride, :]
            for dy in range(kh) for dx in range(kw)
        ]
        cols = jnp.concatenate(slices, axis=-1).reshape(n * ho * wo, kh * kw * cin)

    out = _fused_conv_matmul(cols, w.reshape(kh * kw * cin, cout), bias,
                             activation, out_dtype=out_dtype)
    return jnp.transpose(out.reshape(n, ho, wo, cout), (0, 3, 1, 2))   # -> NCHW


def make_conv_bn_act_params(key, cin, cout, ksize, bn=True, conv_bias=False, eps=1e-5):
    """Conv + (eval-mode) BatchNorm folded: w' = w * scale, b' = beta + (b - mean) * scale."""
    kw_, kb, k1, k2, k3, k4 = jax.random.split(key, 6)
    fan_in = cin * ksize * ksize
    w = jax.random.normal(kw_, (ksize, ksize, cin, cout), jnp.float32) / jnp.sqrt(fan_in)
    b = (0.1 * jax.random.normal(kb, (cout,), jnp.float32)
         if conv_bias else jnp.zeros((cout,), jnp.float32))
    if bn:
        gamma = 1.0 + 0.1 * jax.random.normal(k1, (cout,), jnp.float32)
        beta = 0.1 * jax.random.normal(k2, (cout,), jnp.float32)
        mean = 0.1 * jax.random.normal(k3, (cout,), jnp.float32)
        var = jnp.abs(1.0 + 0.1 * jax.random.normal(k4, (cout,), jnp.float32))
        scale = gamma / jnp.sqrt(var + eps)
        w = w * scale                       # fold BN scale into conv weights (per Cout)
        b = beta + (b - mean) * scale
    return {"w": w, "bias": b}


# ----------------------------- pure-JAX reference --------------------------- #
def conv_bn_act_reference(x_nchw, params, *, stride, activation):
    w, bias = params["w"], params["bias"]
    kh = w.shape[0]
    pad = (kh - 1) // 2
    y = jax.lax.conv_general_dilated(
        x_nchw, jnp.transpose(w, (3, 2, 0, 1)),              # (KH,KW,Cin,Cout)->OIHW
        window_strides=(stride, stride),
        padding=((pad, pad), (pad, pad)),
        dimension_numbers=("NCHW", "OIHW", "NCHW"))
    y = y + bias.reshape(1, -1, 1, 1)
    if activation == "mish":
        return y * jnp.tanh(jax.nn.softplus(y))
    if activation == "relu":
        return jnp.maximum(y, 0.0)
    if activation == "leaky":
        return jnp.where(y >= 0.0, y, 0.1 * y)
    return y


# ----------------------------------- main ----------------------------------- #
if __name__ == "__main__":
    key = jax.random.PRNGKey(0)
    kx, kp1, kp2, kx3, kp3 = jax.random.split(key, 5)
    x = jax.random.normal(kx, (2, 4, 16, 16), jnp.float32)   # NCHW, like PyTorch

    # Conv_Bn_Activation(4, 32, kernel_size=3, stride=2, 'mish')
    p1 = make_conv_bn_act_params(kp1, 4, 32, 3)
    fwd1 = jax.jit(functools.partial(conv_bn_act, stride=2, activation="mish"))
    out1 = jax.block_until_ready(fwd1(x, p1))
    assert out1.shape == (2, 32, 8, 8), out1.shape
    assert bool(jnp.all(jnp.isfinite(out1)))
    ref1 = conv_bn_act_reference(x, p1, stride=2, activation="mish")
    assert bool(jnp.allclose(out1.astype(jnp.float32), ref1, rtol=5e-2, atol=5e-2)), \
        float(jnp.max(jnp.abs(out1.astype(jnp.float32) - ref1)))

    # Conv_Bn_Activation(4, 8, kernel_size=1, stride=1, 'leaky')
    p2 = make_conv_bn_act_params(kp2, 4, 8, 1)
    fwd2 = jax.jit(functools.partial(conv_bn_act, stride=1, activation="leaky"))
    out2 = jax.block_until_ready(fwd2(x, p2))
    assert out2.shape == (2, 8, 16, 16), out2.shape
    ref2 = conv_bn_act_reference(x, p2, stride=1, activation="leaky")
    assert bool(jnp.allclose(out2.astype(jnp.float32), ref2, rtol=5e-2, atol=5e-2)), \
        float(jnp.max(jnp.abs(out2.astype(jnp.float32) - ref2)))

    # Conv_Bn_Activation(256, 64, kernel_size=3, stride=1, 'relu')
    # K = 9*256 = 2304 > 2048 -> exercises the K-tiled accumulator path.
    x3 = jax.random.normal(kx3, (1, 256, 8, 8), jnp.float32)
    p3 = make_conv_bn_act_params(kp3, 256, 64, 3)
    fwd3 = jax.jit(functools.partial(conv_bn_act, stride=1, activation="relu"))
    out3 = jax.block_until_ready(fwd3(x3, p3))
    assert out3.shape == (1, 64, 8, 8), out3.shape
    ref3 = conv_bn_act_reference(x3, p3, stride=1, activation="relu")
    assert bool(jnp.allclose(out3.astype(jnp.float32), ref3, rtol=5e-2, atol=5e-2)), \
        float(jnp.max(jnp.abs(out3.astype(jnp.float32) - ref3)))

    print("KERNEL_OK")
</pallas_src>

<mosaic_0001>
module attributes {stable_mosaic.version = 11 : i64} {
  func.func @_conv_mm_kernel(%arg0: i32, %arg1: i32, %arg2: memref<128x128xbf16, #tpu.memory_space<vmem>>, %arg3: memref<128x128xbf16, #tpu.memory_space<vmem>>, %arg4: memref<1x128xf32, #tpu.memory_space<vmem>>, %arg5: memref<128x128xbf16, #tpu.memory_space<vmem>>) attributes {dimension_semantics = [#tpu.dimension_semantics<parallel>, #tpu.dimension_semantics<parallel>], iteration_bounds = array<i64: 1, 1>, scalar_prefetch = 0 : i64, scratch_operands = 0 : i64, tpu.core_type = #tpu.core_type<tc>, window_params = [{transform_indices = @transform_0, window_bounds = array<i64: 128, 128>}, {transform_indices = @transform_1, window_bounds = array<i64: 128, 128>}, {transform_indices = @transform_2, window_bounds = array<i64: 1, 128>}, {transform_indices = @transform_3, window_bounds = array<i64: 128, 128>}]} {
    %c0 = arith.constant 0 : index
    %c0_0 = arith.constant 0 : index
    %0 = vector.load %arg2[%c0, %c0_0] : memref<128x128xbf16, #tpu.memory_space<vmem>>, vector<128x128xbf16>
    %c0_1 = arith.constant 0 : index
    %c0_2 = arith.constant 0 : index
    %1 = vector.load %arg3[%c0_1, %c0_2] : memref<128x128xbf16, #tpu.memory_space<vmem>>, vector<128x128xbf16>
    %cst = arith.constant dense<0.000000e+00> : vector<128x128xf32>
    %2 = tpu.matmul %0, %1, %cst {dimension_numbers = #tpu.dot_dimension_numbers<[1], [0], [0], [1], [0, 0, 1, 1], [], []>} : vector<128x128xbf16>, vector<128x128xbf16>, vector<128x128xf32> -> vector<128x128xf32>
    %c0_3 = arith.constant 0 : index
    %c0_4 = arith.constant 0 : index
    %3 = vector.load %arg4[%c0_3, %c0_4] : memref<1x128xf32, #tpu.memory_space<vmem>>, vector<1x128xf32>
    %4 = vector.broadcast %3 : vector<1x128xf32> to vector<128x128xf32>
    %5 = arith.addf %2, %4 : vector<128x128xf32>
    %cst_5 = arith.constant 2.000000e+01 : f32
    %6 = vector.broadcast %cst_5 : f32 to vector<128x128xf32>
    %7 = arith.minimumf %5, %6 : vector<128x128xf32>
    %8 = math.exp %7 : vector<128x128xf32>
    %cst_6 = arith.constant 1.000000e+00 : f32
    %9 = vector.broadcast %cst_6 : f32 to vector<128x128xf32>
    %10 = arith.addf %9, %8 : vector<128x128xf32>
    %11 = arith.mulf %10, %10 : vector<128x128xf32>
    %cst_7 = arith.constant 1.000000e+00 : f32
    %12 = vector.broadcast %cst_7 : f32 to vector<128x128xf32>
    %13 = arith.subf %11, %12 : vector<128x128xf32>
    %14 = arith.mulf %5, %13 : vector<128x128xf32>
    %cst_8 = arith.constant 1.000000e+00 : f32
    %15 = vector.broadcast %cst_8 : f32 to vector<128x128xf32>
    %16 = arith.addf %11, %15 : vector<128x128xf32>
    %17 = tpu.reciprocal %16 {approx = true} : vector<128x128xf32> -> vector<128x128xf32>
    %18 = arith.mulf %14, %17 : vector<128x128xf32>
    %19 = arith.truncf %18 : vector<128x128xf32> to vector<128x128xbf16>
    %c0_9 = arith.constant 0 : index
    %c0_10 = arith.constant 0 : index
    %20 = vector.load %arg5[%c0_9, %c0_10] : memref<128x128xbf16, #tpu.memory_space<vmem>>, vector<128x128xbf16>
    tpu.vector_store %arg5[%c0_9, %c0_10], %19 {strides = array<i32>} : memref<128x128xbf16, #tpu.memory_space<vmem>>, vector<128x128xbf16>,
    return
  }
  func.func @transform_0(%arg0: i32, %arg1: i32) -> (i32, i32) {
    %c0_i32 = arith.constant 0 : i32
    %c0_i32_0 = arith.constant 0 : i32
    return %arg0, %c0_i32 : i32, i32
  }
  func.func @transform_1(%arg0: i32, %arg1: i32) -> (i32, i32) {
    %c0_i32 = arith.constant 0 : i32
    %c0_i32_0 = arith.constant 0 : i32
    return %c0_i32, %arg1 : i32, i32
  }
  func.func @transform_2(%arg0: i32, %arg1: i32) -> (i32, i32) {
    %c0_i32 = arith.constant 0 : i32
    %c0_i32_0 = arith.constant 0 : i32
    return %c0_i32, %arg1 : i32, i32
  }
  func.func @transform_3(%arg0: i32, %arg1: i32) -> (i32, i32) {
    %c0_i32 = arith.constant 0 : i32
    return %arg0, %arg1 : i32, i32
  }
}

</mosaic_0001>

<llo_original>
// kernel: conv_bn_act.1
$region0: #{conv_bn_act.1}
  #allocation0 [shape = 'u32[]', space=smem, size = 0x4, offset = 0x4, fixed_abs, tag = 'smem constant byte address 0x4 - core index']
  #allocation1 [shape = 'u32[144,128]{1,0:T(1,128)}', space=vmem, size = 0x12000, scoped, tag = 'internal scratch']
  %s0 = inlined_call_operand.vmem [shape: bf16[128,128], index: 0, kind: input, shape index: {}]
  %s1 = inlined_call_operand.vmem [shape: bf16[128,128], index: 1, kind: input, shape index: {}]
  %s2 = inlined_call_operand.vmem [shape: f32[1,128], index: 2, kind: input, shape index: {}]
  %s3 = inlined_call_operand.hbm [shape: bf16[128,128], index: 3, kind: output, shape index: {}]
  %s4 = sld [smem:[#allocation0]]
  $region22: #{conv_bn_act.1} parent=0
    _
  %s6 = ssub.s32 1, %s4
  %s7 = scalar_select 0, %s6, %s4
  $region1: #{conv_bn_act.1} parent=0
    #allocation2 [shape = 'u8[32768]{0}', space=vmem, size = 0x8000, scoped, tag = 'output window, operand 0, single buffered']
    #allocation3 [shape = 's32[1]{0}', space=sflag, size = 0x4, scoped, tag = 'scoped memory for conv_bn_act.1']
    %8 = vsyncpa [#allocation3], 0
    // Predicated region
    $region2: #{conv_bn_act.1} parent=1 // pred_check
      _
    $region3: #{conv_bn_act.1} parent=1 // pred_check_branch
      %10 = sbr.rel (0) target = $region5
    $region4: #{conv_bn_act.1} parent=1 // pred_region
      _
    $region5: #{conv_bn_act.1} parent=1 // pred_fallthru
      _
    // Predicated region
    $region6: #{conv_bn_act.1} parent=1 // pred_check
      _
    $region7: #{conv_bn_act.1} parent=1 // pred_check_branch
      %12 = sbr.rel (0) target = $region9
    $region8: #{conv_bn_act.1} parent=1 // pred_region
      _
    $region9: #{conv_bn_act.1} parent=1 // pred_fallthru
      _
    // Predicated region
    $region10: #{conv_bn_act.1} parent=1 // pred_check
      _
    $region11: #{conv_bn_act.1} parent=1 // pred_check_branch
      %14 = sbr.rel (0) target = $region13
    $region12: #{conv_bn_act.1} parent=1 // pred_region
      _
    $region13: #{conv_bn_act.1} parent=1 // pred_fallthru
      _
    %v16 = vld [vmem:[%s0] sm:$0xf]
    %v17 = vld [vmem:[%s0 + $0x4] sm:$0xf]
    %v18 = vld [vmem:[%s0 + $0x8] sm:$0xf]
    %v19 = vld [vmem:[%s0 + $0xc] sm:$0xf]
    %v20 = vld [vmem:[%s0 + $0x10] sm:$0xf]
    %v21 = vld [vmem:[%s0 + $0x14] sm:$0xf]
    %v22 = vld [vmem:[%s0 + $0x18] sm:$0xf]
    %v23 = vld [vmem:[%s0 + $0x1c] sm:$0xf]
    %v24 = vld [vmem:[%s0 + $0x20] sm:$0xf]
    %v25 = vld [vmem:[%s0 + $0x24] sm:$0xf]
    %v26 = vld [vmem:[%s0 + $0x28] sm:$0xf]
    %v27 = vld [vmem:[%s0 + $0x2c] sm:$0xf]
    %v28 = vld [vmem:[%s0 + $0x30] sm:$0xf]
    %v29 = vld [vmem:[%s0 + $0x34] sm:$0xf]
    %v30 = vld [vmem:[%s0 + $0x38] sm:$0xf]
    %v31 = vld [vmem:[%s0 + $0x3c] sm:$0xf]
    %v32 = vld [vmem:[%s1] sm:$0xf]
    %v33 = vld [vmem:[%s1 + $0x4] sm:$0xf]
    %v34 = vld [vmem:[%s1 + $0x8] sm:$0xf]
    %v35 = vld [vmem:[%s1 + $0xc] sm:$0xf]
    %v36 = vld [vmem:[%s1 + $0x10] sm:$0xf]
    %v37 = vld [vmem:[%s1 + $0x14] sm:$0xf]
    %v38 = vld [vmem:[%s1 + $0x18] sm:$0xf]
    %v39 = vld [vmem:[%s1 + $0x1c] sm:$0xf]
    %v40 = vld [vmem:[%s1 + $0x20] sm:$0xf]
    %v41 = vld [vmem:[%s1 + $0x24] sm:$0xf]
    %v42 = vld [vmem:[%s1 + $0x28] sm:$0xf]
    %v43 = vld [vmem:[%s1 + $0x2c] sm:$0xf]
    %v44 = vld [vmem:[%s1 + $0x30] sm:$0xf]
    %v45 = vld [vmem:[%s1 + $0x34] sm:$0xf]
    %v46 = vld [vmem:[%s1 + $0x38] sm:$0xf]
    %v47 = vld [vmem:[%s1 + $0x3c] sm:$0xf]
    %v48 = vld [vmem:[%s2] sm:$0x1]
    %v50 = vlaneseq
    %v51 = vshrl.u32 %v50, 7
    %v52 = vsub.s32 0, %v51
    %v53 = vrot.slane %v48, %v52
    %v71 = vunpack.c.l.b16 %v16
    %v72 = vunpack.c.l.b16 %v17
    %v73 = vunpack.c.l.b16 %v18
    %v74 = vunpack.c.l.b16 %v19
    %v75 = vunpack.c.l.b16 %v20
    %v76 = vunpack.c.l.b16 %v21
    %v77 = vunpack.c.l.b16 %v22
    %v78 = vunpack.c.l.b16 %v23
    %v79 = vunpack.c.l.b16 %v24
    %v80 = vunpack.c.l.b16 %v25
    %v81 = vunpack.c.l.b16 %v26
    %v82 = vunpack.c.l.b16 %v27
    %v83 = vunpack.c.l.b16 %v28
    %v84 = vunpack.c.l.b16 %v29
    %v85 = vunpack.c.l.b16 %v30
    %v86 = vunpack.c.l.b16 %v31
    %v87 = vpack.c.b16 %v72, %v71
    %v88 = vpack.c.b16 %v74, %v73
    %v89 = vpack.c.b16 %v76, %v75
    %v90 = vpack.c.b16 %v78, %v77
    %v91 = vpack.c.b16 %v80, %v79
    %v92 = vpack.c.b16 %v82, %v81
    %v93 = vpack.c.b16 %v84, %v83
    %v94 = vpack.c.b16 %v86, %v85
    %v119 = vunpack.c.l.b16 %v32
    %v120 = vunpack.c.l.b16 %v33
    %v121 = vunpack.c.l.b16 %v34
    %v122 = vunpack.c.l.b16 %v35
    %v123 = vunpack.c.l.b16 %v36
    %v124 = vunpack.c.l.b16 %v37
    %v125 = vunpack.c.l.b16 %v38
    %v126 = vunpack.c.l.b16 %v39
    %v127 = vunpack.c.l.b16 %v40
    %v128 = vunpack.c.l.b16 %v41
    %v129 = vunpack.c.l.b16 %v42
    %v130 = vunpack.c.l.b16 %v43
    %v131 = vunpack.c.l.b16 %v44
    %v132 = vunpack.c.l.b16 %v45
    %v133 = vunpack.c.l.b16 %v46
    %v134 = vunpack.c.l.b16 %v47
    %v135 = vpack.c.b16 %v120, %v119
    %v136 = vpack.c.b16 %v122, %v121
    %v137 = vpack.c.b16 %v124, %v123
    %v138 = vpack.c.b16 %v126, %v125
    %v139 = vpack.c.b16 %v128, %v127
    %v140 = vpack.c.b16 %v130, %v129
    %v141 = vpack.c.b16 %v132, %v131
    %v142 = vpack.c.b16 %v134, %v133
    %151 = vmatprep.subr.bf16.mxu0 0
    %152 = vmatpush1.bf16.msra.mxu0 %v135
    %153 = vmatprep.subr.bf16.mxu0 0
    %154 = vmatpush1.bf16.msra.mxu0 %v136
    %155 = vmatprep.subr.bf16.mxu0 0
    %156 = vmatpush1.bf16.msra.mxu0 %v137
    %157 = vmatprep.subr.bf16.mxu0 0
    %158 = vmatpush1.bf16.msra.mxu0 %v138
    %159 = vmatprep.subr.bf16.mxu0 0
    %160 = vmatpush1.bf16.msra.mxu0 %v139
    %161 = vmatprep.subr.bf16.mxu0 0
    %162 = vmatpush1.bf16.msra.mxu0 %v140
    %163 = vmatprep.subr.bf16.mxu0 0
    %164 = vmatpush1.bf16.msra.mxu0 %v141
    %165 = vmatprep.subr.bf16.mxu0 0
    %166 = vmatpush1.bf16.msra.mxu0 %v142
    %167 = vmatprep.subr.bf16.mxu0 0
    %168 = vmatpush1.bf16.msra.mxu0 0
    %169 = vmatprep.subr.bf16.mxu0 0
    %170 = vmatpush1.bf16.msra.mxu0 0
    %171 = vmatprep.subr.bf16.mxu0 0
    %172 = vmatpush1.bf16.msra.mxu0 0
    %173 = vmatprep.subr.bf16.mxu0 0
    %174 = vmatpush1.bf16.msra.mxu0 0
    %175 = vmatprep.subr.bf16.mxu0 0
    %176 = vmatpush1.bf16.msra.mxu0 0
    %177 = vmatprep.subr.bf16.mxu0 0
    %178 = vmatpush1.bf16.msra.mxu0 0
    %179 = vmatprep.subr.bf16.mxu0 0
    %180 = vmatpush1.bf16.msra.mxu0 0
    %181 = vmatprep.subr.bf16.mxu0 0
    %182 = vmatpush1.bf16.msra.mxu0 0
    %183 = vmatprep.mubr.bf16.mxu0 0
    %184 = vmatmul.mubr.bf16.gmra.mrb[0].mxu0 %v87
    %v185 = vpop.f32.mrb[0].mxu0
    %v186 = vadd.f32 %v53, %v185
    %v187 = vpop.f32.mrb[0].mxu0
    %v188 = vpop.f32.mrb[0].mxu0
    %v189 = vadd.f32 %v53, %v188
    %v190 = vpop.f32.mrb[0].mxu0
    %191 = vmatprep.mubr.bf16.mxu0 0
    %192 = vmatmul.mubr.bf16.gmra.mrb[0].mxu0 %v88
    %v193 = vpop.f32.mrb[0].mxu0
    %v194 = vadd.f32 %v53, %v193
    %v195 = vpop.f32.mrb[0].mxu0
    %v196 = vpop.f32.mrb[0].mxu0
    %v197 = vadd.f32 %v53, %v196
    %v198 = vpop.f32.mrb[0].mxu0
    %199 = vmatprep.mubr.bf16.mxu0 0
    %200 = vmatmul.mubr.bf16.gmra.mrb[0].mxu0 %v89
    %v201 = vpop.f32.mrb[0].mxu0
    %v202 = vadd.f32 %v53, %v201
    %v203 = vpop.f32.mrb[0].mxu0
    %v204 = vpop.f32.mrb[0].mxu0
    %v205 = vadd.f32 %v53, %v204
    %v206 = vpop.f32.mrb[0].mxu0
    %207 = vmatprep.mubr.bf16.mxu0 0
    %208 = vmatmul.mubr.bf16.gmra.mrb[0].mxu0 %v90
    %v209 = vpop.f32.mrb[0].mxu0
    %v210 = vadd.f32 %v53, %v209
    %v211 = vpop.f32.mrb[0].mxu0
    %v212 = vpop.f32.mrb[0].mxu0
    %v213 = vadd.f32 %v53, %v212
    %v214 = vpop.f32.mrb[0].mxu0
    %215 = vmatprep.mubr.bf16.mxu0 0
    %216 = vmatmul.mubr.bf16.gmra.mrb[0].mxu0 %v91
    %v217 = vpop.f32.mrb[0].mxu0
    %v218 = vadd.f32 %v53, %v217
    %v219 = vpop.f32.mrb[0].mxu0
    %v220 = vpop.f32.mrb[0].mxu0
    %v221 = vadd.f32 %v53, %v220
    %v222 = vpop.f32.mrb[0].mxu0
    %223 = vmatprep.mubr.bf16.mxu0 0
    %224 = vmatmul.mubr.bf16.gmra.mrb[0].mxu0 %v92
    %v225 = vpop.f32.mrb[0].mxu0
    %v226 = vadd.f32 %v53, %v225
    %v227 = vpop.f32.mrb[0].mxu0
    %v228 = vpop.f32.mrb[0].mxu0
    %v229 = vadd.f32 %v53, %v228
    %v230 = vpop.f32.mrb[0].mxu0
    %231 = vmatprep.mubr.bf16.mxu0 0
    %232 = vmatmul.mubr.bf16.gmra.mrb[0].mxu0 %v93
    %v233 = vpop.f32.mrb[0].mxu0
    %v234 = vadd.f32 %v53, %v233
    %v235 = vpop.f32.mrb[0].mxu0
    %v236 = vpop.f32.mrb[0].mxu0
    %v237 = vadd.f32 %v53, %v236
    %v238 = vpop.f32.mrb[0].mxu0
    %239 = vmatprep.mubr.bf16.mxu0 0
    %240 = vmatmul.mubr.bf16.gmra.mrb[0].mxu0 %v94
    %v241 = vpop.f32.mrb[0].mxu0
    %v242 = vadd.f32 %v53, %v241
    %v243 = vpop.f32.mrb[0].mxu0
    %v244 = vpop.f32.mrb[0].mxu0
    %v245 = vadd.f32 %v53, %v244
    %v246 = vpop.f32.mrb[0].mxu0
    %247 = vdwg.mxu0
    %v248 = vmin.f32 %v186, 20.0
    %v249 = vmin.f32 %v189, 20.0
    %v250 = vmin.f32 %v194, 20.0
    %v251 = vmin.f32 %v197, 20.0
    %v252 = vmin.f32 %v202, 20.0
    %v253 = vmin.f32 %v205, 20.0
    %v254 = vmin.f32 %v210, 20.0
    %v255 = vmin.f32 %v213, 20.0
    %v256 = vmin.f32 %v218, 20.0
    %v257 = vmin.f32 %v221, 20.0
    %v258 = vmin.f32 %v226, 20.0
    %v259 = vmin.f32 %v229, 20.0
    %v260 = vmin.f32 %v234, 20.0
    %v261 = vmin.f32 %v237, 20.0
    %v262 = vmin.f32 %v242, 20.0
    %v263 = vmin.f32 %v245, 20.0
    %v264 = vmul.f32 %v248, 1.442695
    %v265 = vpow.pop %v264
    %v266 = vmul.f32 %v249, 1.442695
    %v267 = vpow.pop %v266
    %v268 = vmul.f32 %v250, 1.442695
    %v269 = vpow.pop %v268
    %v270 = vmul.f32 %v251, 1.442695
    %v271 = vpow.pop %v270
    %v272 = vmul.f32 %v252, 1.442695
    %v273 = vpow.pop %v272
    %v274 = vmul.f32 %v253, 1.442695
    %v275 = vpow.pop %v274
    %v276 = vmul.f32 %v254, 1.442695
    %v277 = vpow.pop %v276
    %v278 = vmul.f32 %v255, 1.442695
    %v279 = vpow.pop %v278
    %v280 = vmul.f32 %v256, 1.442695
    %v281 = vpow.pop %v280
    %v282 = vmul.f32 %v257, 1.442695
    %v283 = vpow.pop %v282
    %v284 = vmul.f32 %v258, 1.442695
    %v285 = vpow.pop %v284
    %v286 = vmul.f32 %v259, 1.442695
    %v287 = vpow.pop %v286
    %v288 = vmul.f32 %v260, 1.442695
    %v289 = vpow.pop %v288
    %v290 = vmul.f32 %v261, 1.442695
    %v291 = vpow.pop %v290
    %v292 = vmul.f32 %v262, 1.442695
    %v293 = vpow.pop %v292
    %v294 = vmul.f32 %v263, 1.442695
    %v295 = vpow.pop %v294
    %v296 = vadd.f32 %v265, 1.0
    %v297 = vadd.f32 %v267, 1.0
    %v298 = vadd.f32 %v269, 1.0
    %v299 = vadd.f32 %v271, 1.0
    %v300 = vadd.f32 %v273, 1.0
    %v301 = vadd.f32 %v275, 1.0
    %v302 = vadd.f32 %v277, 1.0
    %v303 = vadd.f32 %v279, 1.0
    %v304 = vadd.f32 %v281, 1.0
    %v305 = vadd.f32 %v283, 1.0
    %v306 = vadd.f32 %v285, 1.0
    %v307 = vadd.f32 %v287, 1.0
    %v308 = vadd.f32 %v289, 1.0
    %v309 = vadd.f32 %v291, 1.0
    %v310 = vadd.f32 %v293, 1.0
    %v311 = vadd.f32 %v295, 1.0
    %v312 = vmul.f32 %v296, %v296
    %v313 = vmul.f32 %v297, %v297
    %v314 = vmul.f32 %v298, %v298
    %v315 = vmul.f32 %v299, %v299
    %v316 = vmul.f32 %v300, %v300
    %v317 = vmul.f32 %v301, %v301
    %v318 = vmul.f32 %v302, %v302
    %v319 = vmul.f32 %v303, %v303
    %v320 = vmul.f32 %v304, %v304
    %v321 = vmul.f32 %v305, %v305
    %v322 = vmul.f32 %v306, %v306
    %v323 = vmul.f32 %v307, %v307
    %v324 = vmul.f32 %v308, %v308
    %v325 = vmul.f32 %v309, %v309
    %v326 = vmul.f32 %v310, %v310
    %v327 = vmul.f32 %v311, %v311
    %v328 = vsub.f32 %v312, 1.0
    %v329 = vsub.f32 %v313, 1.0
    %v330 = vsub.f32 %v314, 1.0
    %v331 = vsub.f32 %v315, 1.0
    %v332 = vsub.f32 %v316, 1.0
    %v333 = vsub.f32 %v317, 1.0
    %v334 = vsub.f32 %v318, 1.0
    %v335 = vsub.f32 %v319, 1.0
    %v336 = vsub.f32 %v320, 1.0
    %v337 = vsub.f32 %v321, 1.0
    %v338 = vsub.f32 %v322, 1.0
    %v339 = vsub.f32 %v323, 1.0
    %v340 = vsub.f32 %v324, 1.0
    %v341 = vsub.f32 %v325, 1.0
    %v342 = vsub.f32 %v326, 1.0
    %v343 = vsub.f32 %v327, 1.0
    %v344 = vmul.f32 %v186, %v328
    %v345 = vmul.f32 %v189, %v329
    %v346 = vmul.f32 %v194, %v330
    %v347 = vmul.f32 %v197, %v331
    %v348 = vmul.f32 %v202, %v332
    %v349 = vmul.f32 %v205, %v333
    %v350 = vmul.f32 %v210, %v334
    %v351 = vmul.f32 %v213, %v335
    %v352 = vmul.f32 %v218, %v336
    %v353 = vmul.f32 %v221, %v337
    %v354 = vmul.f32 %v226, %v338
    %v355 = vmul.f32 %v229, %v339
    %v356 = vmul.f32 %v234, %v340
    %v357 = vmul.f32 %v237, %v341
    %v358 = vmul.f32 %v242, %v342
    %v359 = vmul.f32 %v245, %v343
    %v360 = vadd.f32 %v312, 1.0
    %v361 = vadd.f32 %v313, 1.0
    %v362 = vadd.f32 %v314, 1.0
    %v363 = vadd.f32 %v315, 1.0
    %v364 = vadd.f32 %v316, 1.0
    %v365 = vadd.f32 %v317, 1.0
    %v366 = vadd.f32 %v318, 1.0
    %v367 = vadd.f32 %v319, 1.0
    %v368 = vadd.f32 %v320, 1.0
    %v369 = vadd.f32 %v321, 1.0
    %v370 = vadd.f32 %v322, 1.0
    %v371 = vadd.f32 %v323, 1.0
    %v372 = vadd.f32 %v324, 1.0
    %v373 = vadd.f32 %v325, 1.0
    %v374 = vadd.f32 %v326, 1.0
    %v375 = vadd.f32 %v327, 1.0
    %v376 = vrcp.pop %v360
    %v377 = vrcp.pop %v361
    %v378 = vrcp.pop %v362
    %v379 = vrcp.pop %v363
    %v380 = vrcp.pop %v364
    %v381 = vrcp.pop %v365
    %v382 = vrcp.pop %v366
    %v383 = vrcp.pop %v367
    %v384 = vrcp.pop %v368
    %v385 = vrcp.pop %v369
    %v386 = vrcp.pop %v370
    %v387 = vrcp.pop %v371
    %v388 = vrcp.pop %v372
    %v389 = vrcp.pop %v373
    %v390 = vrcp.pop %v374
    %v391 = vrcp.pop %v375
    %v392 = vmul.f32 %v344, %v376
    %v393 = vmul.f32 %v345, %v377
    %v394 = vmul.f32 %v346, %v378
    %v395 = vmul.f32 %v347, %v379
    %v396 = vmul.f32 %v348, %v380
    %v397 = vmul.f32 %v349, %v381
    %v398 = vmul.f32 %v350, %v382
    %v399 = vmul.f32 %v351, %v383
    %v400 = vmul.f32 %v352, %v384
    %v401 = vmul.f32 %v353, %v385
    %v402 = vmul.f32 %v354, %v386
    %v403 = vmul.f32 %v355, %v387
    %v404 = vmul.f32 %v356, %v388
    %v405 = vmul.f32 %v357, %v389
    %v406 = vmul.f32 %v358, %v390
    %v407 = vmul.f32 %v359, %v391
    %v408 = vpack.c.bf16 %v393, %v392
    %v409 = vpack.c.bf16 %v395, %v394
    %v410 = vpack.c.bf16 %v397, %v396
    %v411 = vpack.c.bf16 %v399, %v398
    %v412 = vpack.c.bf16 %v401, %v400
    %v413 = vpack.c.bf16 %v403, %v402
    %v414 = vpack.c.bf16 %v405, %v404
    %v415 = vpack.c.bf16 %v407, %v406
    %v424 = vunpack.c.l.b16 %v408
    %v425 = vunpack.c.h.b16 %v408
    %v426 = vunpack.c.l.b16 %v409
    %v427 = vunpack.c.h.b16 %v409
    %v428 = vunpack.c.l.b16 %v410
    %v429 = vunpack.c.h.b16 %v410
    %v430 = vunpack.c.l.b16 %v411
    %v431 = vunpack.c.h.b16 %v411
    %v432 = vunpack.c.l.b16 %v412
    %v433 = vunpack.c.h.b16 %v412
    %v434 = vunpack.c.l.b16 %v413
    %v435 = vunpack.c.h.b16 %v413
    %v436 = vunpack.c.l.b16 %v414
    %v437 = vunpack.c.h.b16 %v414
    %v438 = vunpack.c.l.b16 %v415
    %v439 = vunpack.c.h.b16 %v415
    %v440 = vpack.c.b16 %v424, %v424
    %v441 = vpack.c.b16 %v425, %v425
    %v442 = vpack.c.b16 %v426, %v426
    %v443 = vpack.c.b16 %v427, %v427
    %v444 = vpack.c.b16 %v428, %v428
    %v445 = vpack.c.b16 %v429, %v429
    %v446 = vpack.c.b16 %v430, %v430
    %v447 = vpack.c.b16 %v431, %v431
    %v448 = vpack.c.b16 %v432, %v432
    %v449 = vpack.c.b16 %v433, %v433
    %v450 = vpack.c.b16 %v434, %v434
    %v451 = vpack.c.b16 %v435, %v435
    %v452 = vpack.c.b16 %v436, %v436
    %v453 = vpack.c.b16 %v437, %v437
    %v454 = vpack.c.b16 %v438, %v438
    %v455 = vpack.c.b16 %v439, %v439
    %472 = vst [vmem:[#allocation2] sm:$0xf] %v440
    %473 = vst [vmem:[#allocation2 + $0x4] sm:$0xf] %v441
    %474 = vst [vmem:[#allocation2 + $0x8] sm:$0xf] %v442
    %475 = vst [vmem:[#allocation2 + $0xc] sm:$0xf] %v443
    %476 = vst [vmem:[#allocation2 + $0x10] sm:$0xf] %v444
    %477 = vst [vmem:[#allocation2 + $0x14] sm:$0xf] %v445
    %478 = vst [vmem:[#allocation2 + $0x18] sm:$0xf] %v446
    %479 = vst [vmem:[#allocation2 + $0x1c] sm:$0xf] %v447
    %480 = vst [vmem:[#allocation2 + $0x20] sm:$0xf] %v448
    %481 = vst [vmem:[#allocation2 + $0x24] sm:$0xf] %v449
    %482 = vst [vmem:[#allocation2 + $0x28] sm:$0xf] %v450
    %483 = vst [vmem:[#allocation2 + $0x2c] sm:$0xf] %v451
    %484 = vst [vmem:[#allocation2 + $0x30] sm:$0xf] %v452
    %485 = vst [vmem:[#allocation2 + $0x34] sm:$0xf] %v453
    %486 = vst [vmem:[#allocation2 + $0x38] sm:$0xf] %v454
    %487 = vst [vmem:[#allocation2 + $0x3c] sm:$0xf] %v455
    // Predicated region
    $region14: #{conv_bn_act.1} parent=1 // pred_check
      _
    $region15: #{conv_bn_act.1} parent=1 // pred_check_branch
      %489 = sbr.rel (0) target = $region17
    $region16: #{conv_bn_act.1} parent=1 // pred_region
      %s491 = ssub.s32 1024, 1024
      %492 = vsyncadd [#allocation3], %s491
      %s493 = sshll.u32 [#allocation2], 4
      %s494 = int_to_ptr.vmem [resolvable:$true] %s493
      %499 = dma.vmem_to_hbm [thread:$0]  %s494, 1024, %s3, [#allocation3], 64, 64, 4
    $region17: #{conv_bn_act.1} parent=1 // pred_fallthru
      _
    // Predicated region
    $region18: #{conv_bn_act.1} parent=1 // pred_check
      _
    $region19: #{conv_bn_act.1} parent=1 // pred_check_branch
      %501 = sbr.rel (0) target = $region21
    $region20: #{conv_bn_act.1} parent=1 // pred_region
      %502 = dma.done [#allocation3], 1024
    $region21: #{conv_bn_act.1} parent=1 // pred_fallthru
      _
    %503 = vsyncpa [#allocation3], 1

</llo_original>
